<compile_context>
chip_gen: v5e
topology: v5e:2x2
jax: 0.10.0
libtpu: 0.0.40
codegen_flags: <defaults>
</compile_context>

<pallas_src>
import jax
import jax.numpy as jnp
from jax import lax
from jax.experimental import pallas as pl
from jax.experimental.pallas import tpu as pltpu


def _vmem_budget():
    """(stream budget for tile sizing, vmem_limit_bytes) derived from the chip generation."""
    try:
        cap = int(pltpu.get_tpu_info().vmem_capacity_bytes)
    except Exception:  # no TPU info available at trace time -> assume tightest (v7x-like)
        cap = 64 * 1024 * 1024
    if cap >= 96 * 1024 * 1024:                 # v5e / v6e: 128 MiB physical VMEM
        return 72 * 1024 * 1024, 96 * 1024 * 1024
    return 36 * 1024 * 1024, 48 * 1024 * 1024   # v7x: 64 MiB physical VMEM


def _row_bytes(w_dim, c_dim, w_item, c_item):
    """Per-batch-row VMEM cost: double-buffered streams + f32 temporaries in the body."""
    stream = 2 * (2 * w_dim * w_item + 2 * c_dim * c_item)  # 2 buffers x (in+out, codes+labels)
    temps = 3 * w_dim * 4 + 6 * c_dim * 4                   # d, d*d, upcast c/e/e*e/cm headroom
    return stream + temps


def _pick_batch_tile(batch, row_bytes, budget):
    """Largest multiple-of-8 batch tile fitting the stream budget (capped at padded batch)."""
    b8 = ((batch + 7) // 8) * 8
    cap = max(8, (budget // max(row_bytes, 1)) // 8 * 8)
    return min(cap, b8)


def _recon_layout(tb, w_dim, num_tiles):
    """Lane-dense layout for the reconstruction slab: (rows_per_tile, lanes, reshaped?)."""
    if w_dim % 128 == 0:
        return tb, w_dim, False                 # already lane-dense
    total = tb * w_dim
    for lanes in (512, 384, 256, 128):
        if total % lanes == 0:
            rows = total // lanes
            if rows % 8 == 0 or num_tiles == 1:  # keep the (8,128) sublane rule legal
                return rows, lanes, True
    return tb, w_dim, False                     # fall back to natural (tb, Dw) blocks


def _make_partial_kernel(tb, batch, needs_mask):
    def kernel(in_ref, out_w_ref, codes_ref, labels_ref,
               recon_out, attr_out, colsum_out, gram_out):
        # --- Reconstruction partials: diff in input dtype (bf16 VALU on v6e/v7x), square &
        #     sublane-reduce in f32; the lane reduction happens once in the wrapper.
        d = (in_ref[...] - out_w_ref[...]).astype(jnp.float32)
        recon_out[...] = jnp.sum(d * d, axis=0, keepdims=True).reshape(recon_out.shape)

        # --- Attribute partials: per-column sum of squared errors; the attribute
        #     multiplicity mask is applied once in the wrapper (no per-tile mask multiply).
        c = codes_ref[...].astype(jnp.float32)
        e = c - labels_ref[...].astype(jnp.float32)
        attr_out[...] = jnp.sum(e * e, axis=0, keepdims=True).reshape(attr_out.shape)

        # --- Correlation partial statistics: per-tile centering (robust vs. raw sumsq),
        #     centered Gram via dot_general contracting dim 0 (no explicit transpose).
        colsum = jnp.sum(c, axis=0, keepdims=True)                      # (1, C)
        if needs_mask:
            i = pl.program_id(0)
            rows = lax.broadcasted_iota(jnp.int32, (tb, 1), 0)
            valid = ((i * tb + rows) < batch).astype(jnp.float32)       # (tb, 1)
            n_k = jnp.sum(valid, axis=0, keepdims=True)                 # (1, 1) rows present
            cm = (c - colsum / n_k) * valid                             # pad rows excluded
        else:
            cm = c - colsum * (1.0 / tb)
        colsum_out[...] = colsum.reshape(colsum_out.shape)
        gram_out[...] = lax.dot_general(                                # cm^T @ cm  (C, C)
            cm, cm, dimension_numbers=(((0,), (0,)), ((), ())),
            preferred_element_type=jnp.float32).reshape(gram_out.shape)

    return kernel


def training_loss(inputs, outputs, codes, labels, attributes,
                  attr_weight=1.0, dis_weight=1.0):
    """Pallas equivalent of TrainingLoss(attributes).forward(inputs, outputs, codes, labels)."""
    B, Dw = inputs.shape
    C = codes.shape[1]
    if B < 2:
        raise ValueError("TrainingLoss requires batch >= 2 (std with ddof=1).")

    budget, vmem_limit = _vmem_budget()
    row_bytes = _row_bytes(Dw, C, inputs.dtype.itemsize, codes.dtype.itemsize)
    tb = _pick_batch_tile(B, row_bytes, budget)
    nt = -(-B // tb)            # cdiv
    B_pad = nt * tb
    needs_mask = B_pad != B

    if needs_mask:
        pad = ((0, B_pad - B), (0, 0))
        inputs = jnp.pad(inputs, pad)    # zero rows -> zero recon / attr contribution
        outputs = jnp.pad(outputs, pad)
        codes = jnp.pad(codes, pad)      # excluded from the correlation stats in-kernel
        labels = jnp.pad(labels, pad)

    rows_r, lanes, reshaped = _recon_layout(tb, Dw, nt)
    if reshaped:                          # recon is order-invariant: lane-dense slab is free
        inputs_r = inputs.reshape(B_pad * Dw // lanes, lanes)
        outputs_r = outputs.reshape(B_pad * Dw // lanes, lanes)
    else:
        inputs_r, outputs_r = inputs, outputs

    kernel = _make_partial_kernel(tb, B, needs_mask)

    cost = pl.CostEstimate(
        flops=int(2 * B_pad * C * C + 4 * B_pad * Dw + 8 * B_pad * C),
        transcendentals=0,
        bytes_accessed=int(2 * B_pad * Dw * inputs.dtype.itemsize
                           + 2 * B_pad * C * codes.dtype.itemsize
                           + 4 * nt * (lanes + 2 * C + C * C)),
    )

    recon_p, attr_p, colsum_p, gram_p = pl.pallas_call(
        kernel,
        out_shape=(
            jax.ShapeDtypeStruct((nt, 1, lanes), jnp.float32),   # per-tile recon per-lane sums
            jax.ShapeDtypeStruct((nt, 1, C), jnp.float32),       # per-tile attr per-column sums
            jax.ShapeDtypeStruct((nt, 1, C), jnp.float32),       # per-tile column sums
            jax.ShapeDtypeStruct((nt, C, C), jnp.float32),       # per-tile centered Gram
        ),
        grid_spec=pltpu.PrefetchScalarGridSpec(
            num_scalar_prefetch=0,
            grid=(nt,),
            in_specs=[
                pl.BlockSpec((rows_r, lanes), lambda i: (i, 0)),  # inputs (recon slab)
                pl.BlockSpec((rows_r, lanes), lambda i: (i, 0)),  # outputs (recon slab)
                pl.BlockSpec((tb, C), lambda i: (i, 0)),          # codes
                pl.BlockSpec((tb, C), lambda i: (i, 0)),          # labels
            ],
            out_specs=[
                pl.BlockSpec((1, 1, lanes), lambda i: (i, 0, 0)),
                pl.BlockSpec((1, 1, C), lambda i: (i, 0, 0)),
                pl.BlockSpec((1, 1, C), lambda i: (i, 0, 0)),
                pl.BlockSpec((1, C, C), lambda i: (i, 0, 0)),
            ],
        ),
        compiler_params=pltpu.CompilerParams(
            dimension_semantics=("parallel",),   # independent tiles -> v7x dual-TC sharding
            vmem_limit_bytes=vmem_limit,
        ),
        cost_estimate=cost,
    )(inputs_r, outputs_r, codes, labels)

    # ---- tiny O(nt*C^2) finalize in plain JAX (Chan-style combination of tile stats) ----
    counts = jnp.full((nt,), float(tb), jnp.float32).at[-1].set(float(B - (nt - 1) * tb))
    colsum = colsum_p[:, 0, :]                                   # (nt, C)
    means = colsum / counts[:, None]
    grand_mean = jnp.sum(colsum, axis=0) / B                     # (C,)
    delta = means - grand_mean[None, :]
    total_cov = jnp.sum(gram_p, axis=0) + jnp.einsum('k,kc,kd->cd', counts, delta, delta)

    var = jnp.diagonal(total_cov) / (B - 1)                      # torch.std default: ddof=1
    inv_std = lax.rsqrt(var)
    corr = total_cov * (inv_std[:, None] * inv_std[None, :]) / B
    dis = jnp.sum(jnp.abs(jnp.eye(C, dtype=jnp.float32) - corr))

    recon = jnp.sum(recon_p) / (B * Dw)
    col_mask = jnp.zeros((C,), jnp.float32).at[attributes].add(1.0)  # duplicates counted like fancy indexing
    attr = jnp.sum(jnp.sum(attr_p[:, 0, :], axis=0) * col_mask) / B

    return recon + attr_weight * attr + dis_weight * dis


def _reference_loss(inputs, outputs, codes, labels, attributes,
                    attr_weight=1.0, dis_weight=1.0):
    """Plain-JAX reference mirroring the PyTorch module, for a sanity check."""
    recon = jnp.mean((inputs - outputs) ** 2)
    attr = jnp.mean(jnp.sum((codes[:, attributes] - labels[:, attributes]) ** 2, axis=1))
    B, C = codes.shape
    cs = (codes - jnp.mean(codes, axis=0)) / jnp.std(codes, axis=0, ddof=1)
    corr = cs.T @ cs / B
    dis = jnp.sum(jnp.abs(jnp.eye(C) - corr))
    return recon + attr_weight * attr + dis_weight * dis


if __name__ == "__main__":
    key = jax.random.PRNGKey(0)
    k1, k2, k3, k4, k5, k6, k7, k8 = jax.random.split(key, 8)
    attributes = jnp.array([0, 2, 3, 5], dtype=jnp.int32)     # subset of attributes

    # Case 1: lane-dense reshaped recon slab, no batch padding.
    B, Dw, C = 8, 32, 8
    inputs = jax.random.normal(k1, (B, Dw), jnp.float32)
    outputs = jax.random.normal(k2, (B, Dw), jnp.float32)
    codes = jax.random.normal(k3, (B, C), jnp.float32)
    labels = jax.random.normal(k4, (B, C), jnp.float32)
    loss = training_loss(inputs, outputs, codes, labels, attributes)
    jax.block_until_ready(loss)
    ref = _reference_loss(inputs, outputs, codes, labels, attributes)
    assert jnp.allclose(loss, ref, rtol=1e-4, atol=1e-4), (loss, ref)

    # Case 2: batch padding + in-kernel row-mask path (B not a multiple of 8).
    B2, Dw2, C2 = 6, 24, 8
    inputs2 = jax.random.normal(k5, (B2, Dw2), jnp.float32)
    outputs2 = jax.random.normal(k6, (B2, Dw2), jnp.float32)
    codes2 = jax.random.normal(k7, (B2, C2), jnp.float32)
    labels2 = jax.random.normal(k8, (B2, C2), jnp.float32)
    loss2 = training_loss(inputs2, outputs2, codes2, labels2, attributes)
    jax.block_until_ready(loss2)
    ref2 = _reference_loss(inputs2, outputs2, codes2, labels2, attributes)
    assert jnp.allclose(loss2, ref2, rtol=1e-4, atol=1e-4), (loss2, ref2)

    print("KERNEL_OK")
</pallas_src>

<mosaic_0001>
module attributes {stable_mosaic.version = 11 : i64} {
  func.func @kernel(%arg0: i32, %arg1: memref<1x256xf32, #tpu.memory_space<vmem>>, %arg2: memref<1x256xf32, #tpu.memory_space<vmem>>, %arg3: memref<8x8xf32, #tpu.memory_space<vmem>>, %arg4: memref<8x8xf32, #tpu.memory_space<vmem>>, %arg5: memref<1x1x256xf32, #tpu.memory_space<vmem>>, %arg6: memref<1x1x8xf32, #tpu.memory_space<vmem>>, %arg7: memref<1x1x8xf32, #tpu.memory_space<vmem>>, %arg8: memref<1x8x8xf32, #tpu.memory_space<vmem>>) attributes {dimension_semantics = [#tpu.dimension_semantics<parallel>], iteration_bounds = array<i64: 1>, scalar_prefetch = 0 : i64, scratch_operands = 0 : i64, tpu.core_type = #tpu.core_type<tc>, window_params = [{transform_indices = @transform_0, window_bounds = array<i64: 1, 256>}, {transform_indices = @transform_1, window_bounds = array<i64: 1, 256>}, {transform_indices = @transform_2, window_bounds = array<i64: 8, 8>}, {transform_indices = @transform_3, window_bounds = array<i64: 8, 8>}, {transform_indices = @transform_4, window_bounds = array<i64: 1, 1, 256>}, {transform_indices = @transform_5, window_bounds = array<i64: 1, 1, 8>}, {transform_indices = @transform_6, window_bounds = array<i64: 1, 1, 8>}, {transform_indices = @transform_7, window_bounds = array<i64: 1, 8, 8>}]} {
    %c0 = arith.constant 0 : index
    %c0_0 = arith.constant 0 : index
    %0 = vector.load %arg1[%c0, %c0_0] : memref<1x256xf32, #tpu.memory_space<vmem>>, vector<1x256xf32>
    %c0_1 = arith.constant 0 : index
    %c0_2 = arith.constant 0 : index
    %1 = vector.load %arg2[%c0_1, %c0_2] : memref<1x256xf32, #tpu.memory_space<vmem>>, vector<1x256xf32>
    %2 = arith.subf %0, %1 : vector<1x256xf32>
    %3 = arith.mulf %2, %2 : vector<1x256xf32>
    %cst = arith.constant dense<0.000000e+00> : vector<256xf32>
    %4 = vector.multi_reduction <add>, %3, %cst [0] : vector<1x256xf32> to vector<256xf32>
    %5 = vector.shape_cast %4 : vector<256xf32> to vector<1x256xf32>
    %6 = vector.shape_cast %5 : vector<1x256xf32> to vector<1x1x256xf32>
    %c0_3 = arith.constant 0 : index
    %c0_4 = arith.constant 0 : index
    %c0_5 = arith.constant 0 : index
    %7 = vector.load %arg5[%c0_3, %c0_4, %c0_5] : memref<1x1x256xf32, #tpu.memory_space<vmem>>, vector<1x1x256xf32>
    tpu.vector_store %arg5[%c0_3, %c0_4, %c0_5], %6 {strides = array<i32>} : memref<1x1x256xf32, #tpu.memory_space<vmem>>, vector<1x1x256xf32>,
    %c0_6 = arith.constant 0 : index
    %c0_7 = arith.constant 0 : index
    %8 = vector.load %arg3[%c0_6, %c0_7] : memref<8x8xf32, #tpu.memory_space<vmem>>, vector<8x8xf32>
    %c0_8 = arith.constant 0 : index
    %c0_9 = arith.constant 0 : index
    %9 = vector.load %arg4[%c0_8, %c0_9] : memref<8x8xf32, #tpu.memory_space<vmem>>, vector<8x8xf32>
    %10 = arith.subf %8, %9 : vector<8x8xf32>
    %11 = arith.mulf %10, %10 : vector<8x8xf32>
    %cst_10 = arith.constant dense<0.000000e+00> : vector<8xf32>
    %12 = vector.multi_reduction <add>, %11, %cst_10 [0] : vector<8x8xf32> to vector<8xf32>
    %13 = vector.shape_cast %12 : vector<8xf32> to vector<1x8xf32>
    %14 = vector.shape_cast %13 : vector<1x8xf32> to vector<1x1x8xf32>
    %c0_11 = arith.constant 0 : index
    %c0_12 = arith.constant 0 : index
    %c0_13 = arith.constant 0 : index
    %15 = vector.load %arg6[%c0_11, %c0_12, %c0_13] : memref<1x1x8xf32, #tpu.memory_space<vmem>>, vector<1x1x8xf32>
    tpu.vector_store %arg6[%c0_11, %c0_12, %c0_13], %14 {strides = array<i32>} : memref<1x1x8xf32, #tpu.memory_space<vmem>>, vector<1x1x8xf32>,
    %cst_14 = arith.constant dense<0.000000e+00> : vector<8xf32>
    %16 = vector.multi_reduction <add>, %8, %cst_14 [0] : vector<8x8xf32> to vector<8xf32>
    %17 = vector.shape_cast %16 : vector<8xf32> to vector<1x8xf32>
    %cst_15 = arith.constant 1.250000e-01 : f32
    %18 = vector.broadcast %cst_15 : f32 to vector<1x8xf32>
    %19 = arith.mulf %17, %18 : vector<1x8xf32>
    %20 = vector.broadcast %19 : vector<1x8xf32> to vector<8x8xf32>
    %21 = arith.subf %8, %20 : vector<8x8xf32>
    %22 = vector.shape_cast %17 : vector<1x8xf32> to vector<1x1x8xf32>
    %c0_16 = arith.constant 0 : index
    %c0_17 = arith.constant 0 : index
    %c0_18 = arith.constant 0 : index
    %23 = vector.load %arg7[%c0_16, %c0_17, %c0_18] : memref<1x1x8xf32, #tpu.memory_space<vmem>>, vector<1x1x8xf32>
    tpu.vector_store %arg7[%c0_16, %c0_17, %c0_18], %22 {strides = array<i32>} : memref<1x1x8xf32, #tpu.memory_space<vmem>>, vector<1x1x8xf32>,
    %cst_19 = arith.constant dense<0.000000e+00> : vector<8x8xf32>
    %24 = tpu.matmul %21, %21, %cst_19 {dimension_numbers = #tpu.dot_dimension_numbers<[0], [0], [1], [1], [0, 1, 1, 1], [], []>} : vector<8x8xf32>, vector<8x8xf32>, vector<8x8xf32> -> vector<8x8xf32>
    %25 = vector.shape_cast %24 : vector<8x8xf32> to vector<1x8x8xf32>
    %c0_20 = arith.constant 0 : index
    %c0_21 = arith.constant 0 : index
    %c0_22 = arith.constant 0 : index
    %26 = vector.load %arg8[%c0_20, %c0_21, %c0_22] : memref<1x8x8xf32, #tpu.memory_space<vmem>>, vector<1x8x8xf32>
    tpu.vector_store %arg8[%c0_20, %c0_21, %c0_22], %25 {strides = array<i32>} : memref<1x8x8xf32, #tpu.memory_space<vmem>>, vector<1x8x8xf32>,
    return
  }
  func.func @transform_0(%arg0: i32) -> (i32, i32) {
    %c0_i32 = arith.constant 0 : i32
    %c0_i32_0 = arith.constant 0 : i32
    return %arg0, %c0_i32 : i32, i32
  }
  func.func @transform_1(%arg0: i32) -> (i32, i32) {
    %c0_i32 = arith.constant 0 : i32
    %c0_i32_0 = arith.constant 0 : i32
    return %arg0, %c0_i32 : i32, i32
  }
  func.func @transform_2(%arg0: i32) -> (i32, i32) {
    %c0_i32 = arith.constant 0 : i32
    %c0_i32_0 = arith.constant 0 : i32
    return %arg0, %c0_i32 : i32, i32
  }
  func.func @transform_3(%arg0: i32) -> (i32, i32) {
    %c0_i32 = arith.constant 0 : i32
    %c0_i32_0 = arith.constant 0 : i32
    return %arg0, %c0_i32 : i32, i32
  }
  func.func @transform_4(%arg0: i32) -> (i32, i32, i32) {
    %c0_i32 = arith.constant 0 : i32
    %c0_i32_0 = arith.constant 0 : i32
    %c0_i32_1 = arith.constant 0 : i32
    return %arg0, %c0_i32, %c0_i32_0 : i32, i32, i32
  }
  func.func @transform_5(%arg0: i32) -> (i32, i32, i32) {
    %c0_i32 = arith.constant 0 : i32
    %c0_i32_0 = arith.constant 0 : i32
    %c0_i32_1 = arith.constant 0 : i32
    return %arg0, %c0_i32, %c0_i32_0 : i32, i32, i32
  }
  func.func @transform_6(%arg0: i32) -> (i32, i32, i32) {
    %c0_i32 = arith.constant 0 : i32
    %c0_i32_0 = arith.constant 0 : i32
    %c0_i32_1 = arith.constant 0 : i32
    return %arg0, %c0_i32, %c0_i32_0 : i32, i32, i32
  }
  func.func @transform_7(%arg0: i32) -> (i32, i32, i32) {
    %c0_i32 = arith.constant 0 : i32
    %c0_i32_0 = arith.constant 0 : i32
    %c0_i32_1 = arith.constant 0 : i32
    return %arg0, %c0_i32, %c0_i32_0 : i32, i32, i32
  }
}

</mosaic_0001>

<llo_original>
// kernel: tpu_custom_call.1
$region0: #{tpu_custom_call.1}
  #allocation0 [shape = 'u32[]', space=smem, size = 0x4, offset = 0x4, fixed_abs, tag = 'smem constant byte address 0x4 - core index']
  #allocation1 [shape = 'u32[72,128]{1,0:T(1,128)}', space=vmem, size = 0x9000, scoped, tag = 'internal scratch']
  %s0 = inlined_call_operand.hbm [shape: f32[1,256], index: 0, kind: input, shape index: {}]
  %s1 = inlined_call_operand.hbm [shape: f32[1,256], index: 1, kind: input, shape index: {}]
  %s2 = inlined_call_operand.hbm [shape: f32[8,8], index: 2, kind: input, shape index: {}]
  %s3 = inlined_call_operand.hbm [shape: f32[8,8], index: 3, kind: input, shape index: {}]
  %s4 = inlined_call_operand.hbm [shape: f32[1,1,256], index: 4, kind: output, shape index: {0}]
  %s5 = inlined_call_operand.hbm [shape: f32[1,1,8], index: 5, kind: output, shape index: {1}]
  %s6 = inlined_call_operand.hbm [shape: f32[1,1,8], index: 6, kind: output, shape index: {2}]
  %s7 = inlined_call_operand.hbm [shape: f32[1,8,8], index: 7, kind: output, shape index: {3}]
  %8 = xla_tuple %s4, %s5, %s6, %s7
  %s9 = sld [smem:[#allocation0]]
  $region66: #{tpu_custom_call.1} parent=0
    _
  %s11 = ssub.s32 1, %s9
  %s12 = scalar_select 0, %s11, %s9
  $region1: #{tpu_custom_call.1} parent=0
    #allocation2 [shape = 'u8[1024]{0}', space=vmem, size = 0x400, scoped, tag = 'input window, operand 0, single buffered']
    #allocation3 [shape = 's32[1]{0}', space=sflag, size = 0x4, scoped, tag = 'scoped memory for tpu_custom_call.1']
    #allocation4 [shape = 's32[1]{0}', space=sflag, size = 0x4, scoped, tag = 'scoped memory for tpu_custom_call.1']
    #allocation5 [shape = 'u8[1024]{0}', space=vmem, size = 0x400, scoped, tag = 'input window, operand 1, single buffered']
    #allocation6 [shape = 's32[1]{0}', space=sflag, size = 0x4, scoped, tag = 'scoped memory for tpu_custom_call.1']
    #allocation7 [shape = 'u8[4096]{0}', space=vmem, size = 0x1000, scoped, tag = 'input window, operand 2, single buffered']
    #allocation8 [shape = 'u8[4096]{0}', space=vmem, size = 0x1000, scoped, tag = 'input window, operand 3, single buffered']
    #allocation9 [shape = 's32[1]{0}', space=sflag, size = 0x4, scoped, tag = 'scoped memory for tpu_custom_call.1']
    #allocation10 [shape = 'u8[1024]{0}', space=vmem, size = 0x400, scoped, tag = 'output window, operand 0, single buffered']
    #allocation11 [shape = 'u8[512]{0}', space=vmem, size = 0x400, scoped, tag = 'output window, operand 1, single buffered']
    #allocation12 [shape = 's32[1]{0}', space=sflag, size = 0x4, scoped, tag = 'scoped memory for tpu_custom_call.1']
    #allocation13 [shape = 'u8[512]{0}', space=vmem, size = 0x400, scoped, tag = 'output window, operand 2, single buffered']
    #allocation14 [shape = 'u8[4096]{0}', space=vmem, size = 0x1000, scoped, tag = 'output window, operand 3, single buffered']
    #allocation15 [shape = 's32[1]{0}', space=sflag, size = 0x4, scoped, tag = 'scoped memory for tpu_custom_call.1']
    %13 = vsyncpa [#allocation3], 0
    %14 = vsyncpa [#allocation6], 0
    %15 = vsyncpa [#allocation9], 0
    %16 = vsyncpa [#allocation4], 0
    %17 = vsyncpa [#allocation12], 0
    %18 = vsyncpa [#allocation15], 0
    // Predicated region
    $region2: #{tpu_custom_call.1} parent=1 // pred_check
      _
    $region3: #{tpu_custom_call.1} parent=1 // pred_check_branch
      %20 = sbr.rel (0) target = $region5
    $region4: #{tpu_custom_call.1} parent=1 // pred_region
      %22 = vsyncadd [#allocation3], 0
      %s24 = sshll.u32 %s0, 4
      %s25 = int_to_ptr.hbm [resolvable:$true] %s24
      %s26 = sshll.u32 [#allocation2], 4
      %s27 = int_to_ptr.vmem [resolvable:$true] %s26
      %29 = dma.hbm_to_vmem [thread:$0]  %s25, 32, %s27, [#allocation3]
    $region5: #{tpu_custom_call.1} parent=1 // pred_fallthru
      _
    // Predicated region
    $region6: #{tpu_custom_call.1} parent=1 // pred_check
      _
    $region7: #{tpu_custom_call.1} parent=1 // pred_check_branch
      %31 = sbr.rel (0) target = $region9
    $region8: #{tpu_custom_call.1} parent=1 // pred_region
      %33 = vsyncadd [#allocation6], 0
      %s35 = sshll.u32 %s1, 4
      %s36 = int_to_ptr.hbm [resolvable:$true] %s35
      %s37 = sshll.u32 [#allocation5], 4
      %s38 = int_to_ptr.vmem [resolvable:$true] %s37
      %40 = dma.hbm_to_vmem [thread:$0]  %s36, 32, %s38, [#allocation6]
    $region9: #{tpu_custom_call.1} parent=1 // pred_fallthru
      _
    // Predicated region
    $region10: #{tpu_custom_call.1} parent=1 // pred_check
      _
    $region11: #{tpu_custom_call.1} parent=1 // pred_check_branch
      %42 = sbr.rel (0) target = $region13
    $region12: #{tpu_custom_call.1} parent=1 // pred_region
      %44 = vsyncadd [#allocation6], 0
      %s46 = sshll.u32 %s2, 4
      %s47 = int_to_ptr.hbm [resolvable:$true] %s46
      %s48 = sshll.u32 [#allocation7], 4
      %s49 = int_to_ptr.vmem [resolvable:$true] %s48
      %51 = dma.hbm_to_vmem [thread:$0]  %s47, 128, %s49, [#allocation6]
    $region13: #{tpu_custom_call.1} parent=1 // pred_fallthru
      _
    // Predicated region
    $region14: #{tpu_custom_call.1} parent=1 // pred_check
      _
    $region15: #{tpu_custom_call.1} parent=1 // pred_check_branch
      %53 = sbr.rel (0) target = $region17
    $region16: #{tpu_custom_call.1} parent=1 // pred_region
      %55 = vsyncadd [#allocation9], 0
      %s57 = sshll.u32 %s3, 4
      %s58 = int_to_ptr.hbm [resolvable:$true] %s57
      %s59 = sshll.u32 [#allocation8], 4
      %s60 = int_to_ptr.vmem [resolvable:$true] %s59
      %62 = dma.hbm_to_vmem [thread:$0]  %s58, 128, %s60, [#allocation9]
    $region17: #{tpu_custom_call.1} parent=1 // pred_fallthru
      _
    // Predicated region
    $region18: #{tpu_custom_call.1} parent=1 // pred_check
      _
    $region19: #{tpu_custom_call.1} parent=1 // pred_check_branch
      %64 = sbr.rel (0) target = $region21
    $region20: #{tpu_custom_call.1} parent=1 // pred_region
      %66 = dma.done [#allocation3], 32
    $region21: #{tpu_custom_call.1} parent=1 // pred_fallthru
      _
    // Predicated region
    $region22: #{tpu_custom_call.1} parent=1 // pred_check
      _
    $region23: #{tpu_custom_call.1} parent=1 // pred_check_branch
      %68 = sbr.rel (0) target = $region25
    $region24: #{tpu_custom_call.1} parent=1 // pred_region
      %70 = dma.done [#allocation6], 32
    $region25: #{tpu_custom_call.1} parent=1 // pred_fallthru
      _
    // Predicated region
    $region26: #{tpu_custom_call.1} parent=1 // pred_check
      _
    $region27: #{tpu_custom_call.1} parent=1 // pred_check_branch
      %72 = sbr.rel (0) target = $region29
    $region28: #{tpu_custom_call.1} parent=1 // pred_region
      %74 = dma.done [#allocation6], 128
    $region29: #{tpu_custom_call.1} parent=1 // pred_fallthru
      _
    // Predicated region
    $region30: #{tpu_custom_call.1} parent=1 // pred_check
      _
    $region31: #{tpu_custom_call.1} parent=1 // pred_check_branch
      %76 = sbr.rel (0) target = $region33
    $region32: #{tpu_custom_call.1} parent=1 // pred_region
      %78 = dma.done [#allocation9], 128
    $region33: #{tpu_custom_call.1} parent=1 // pred_fallthru
      _
    %v79 = vld [vmem:[#allocation2] sm:$0x3]
    %v80 = vld [vmem:[#allocation5] sm:$0x3]
    %v81 = vsub.f32 %v79, %v80
    %v82 = vmul.f32 %v81, %v81
    %v83 = vadd.f32 %v82, 0.0
    %v84 = vlaneseq
    %vm85 = vcmp.ge.s32.totalorder %v84, 0
    %vm86 = vcmp.lt.s32.totalorder %v84, 256
    %vm87 = vmand %vm85, %vm86
    %88 = vst.msk [vmem:[#allocation10] sm:$0x3] %vm87, %v83
    %v89 = vld [vmem:[#allocation7] sm:$0xff]
    %v90 = vld [vmem:[#allocation8] sm:$0xff]
    %v91 = vsub.f32 %v89, %v90
    %v92 = vmul.f32 %v91, %v91
    %vm93 = vcmask 64512
    %v94 = vsel %vm93, %v92, 0.0
    %v95 = vrot.slane %v94, 4
    %v96 = vadd.f32 %v94, %v95
    %v97 = vrot.slane %v96, 2
    %v98 = vadd.f32 %v96, %v97
    %v99 = vrot.slane %v98, 1
    %v100 = vadd.f32 %v98, %v99
    %vm101 = vcmask 57344
    %102 = vst.msk [vmem:[#allocation11] sm:$0x1] %vm101, %v100
    %v103 = vsel %vm93, %v89, 0.0
    %v104 = vrot.slane %v103, 4
    %v105 = vadd.f32 %v103, %v104
    %v106 = vrot.slane %v105, 2
    %v107 = vadd.f32 %v105, %v106
    %v108 = vrot.slane %v107, 1
    %v109 = vadd.f32 %v107, %v108
    %v110 = vmul.f32 %v109, 0.125
    %v111 = vsub.f32 %v89, %v110
    %112 = vst.msk [vmem:[#allocation13] sm:$0x1] %vm101, %v109
    %113 = vxpose.xlu0.b32.start [1/16] %v111, 128
    %114 = vxpose.xlu0.b32.cont [2/16] 0.0, 128
    %115 = vxpose.xlu0.b32.cont [3/16] 0.0, 128
    %116 = vxpose.xlu0.b32.cont [4/16] 0.0, 128
    %117 = vxpose.xlu0.b32.cont [5/16] 0.0, 128
    %118 = vxpose.xlu0.b32.cont [6/16] 0.0, 128
    %119 = vxpose.xlu0.b32.cont [7/16] 0.0, 128
    %120 = vxpose.xlu0.b32.cont [8/16] 0.0, 128
    %121 = vxpose.xlu0.b32.cont [9/16] 0.0, 128
    %122 = vxpose.xlu0.b32.cont [10/16] 0.0, 128
    %123 = vxpose.xlu0.b32.cont [11/16] 0.0, 128
    %124 = vxpose.xlu0.b32.cont [12/16] 0.0, 128
    %125 = vxpose.xlu0.b32.cont [13/16] 0.0, 128
    %126 = vxpose.xlu0.b32.cont [14/16] 0.0, 128
    %127 = vxpose.xlu0.b32.cont [15/16] 0.0, 128
    %128 = vxpose.xlu0.b32.end [16/16] 0.0, 128
    %v129 = vpop.trf.xlu0
    %v130 = vpop.trf.xlu0
    %v131 = vpop.trf.xlu0
    %v132 = vpop.trf.xlu0
    %v133 = vpop.trf.xlu0
    %v134 = vpop.trf.xlu0
    %v135 = vpop.trf.xlu0
    %v136 = vpop.trf.xlu0
    %v137 = vpop.trf.xlu0
    %v138 = vpop.trf.xlu0
    %v139 = vpop.trf.xlu0
    %v140 = vpop.trf.xlu0
    %v141 = vpop.trf.xlu0
    %v142 = vpop.trf.xlu0
    %v143 = vpop.trf.xlu0
    %v144 = vpop.trf.xlu0
    %v146 = vsel %vm93, %v129, 0
    %148 = vmatpush.msra.mxu0 0.0
    %149 = vmatpush.msra.mxu0 0.0
    %150 = vmatpush.msra.mxu0 0.0
    %151 = vmatpush.msra.mxu0 0.0
    %152 = vmatpush.msra.mxu0 0.0
    %153 = vmatpush.msra.mxu0 0.0
    %154 = vmatpush.msra.mxu0 0.0
    %155 = vmatpush.msra.mxu0 0.0
    %156 = vmatpush.msra.mxu0 0.0
    %157 = vmatpush.msra.mxu0 0.0
    %158 = vmatpush.msra.mxu0 0.0
    %159 = vmatpush.msra.mxu0 0.0
    %160 = vmatpush.msra.mxu0 0.0
    %161 = vmatpush.msra.mxu0 0.0
    %162 = vmatpush.msra.mxu0 0.0
    %163 = vmatpush.msra.mxu0 %v111
    %164 = vmatmul.f32.gmra.mxu0 %v146
    %v165 = vpop.f32.mrf.mxu0
    %v166 = vadd.f32 0.0, %v165
    %167 = vdwg.mxu0
    %168 = vst.msk [vmem:[#allocation14] sm:$0xff] %vm93, %v166
    // Predicated region
    $region34: #{tpu_custom_call.1} parent=1 // pred_check
      _
    $region35: #{tpu_custom_call.1} parent=1 // pred_check_branch
      %170 = sbr.rel (0) target = $region37
    $region36: #{tpu_custom_call.1} parent=1 // pred_region
      %172 = vsyncadd [#allocation4], 0
      %s174 = sshll.u32 [#allocation10], 4
      %s175 = int_to_ptr.vmem [resolvable:$true] %s174
      %s176 = sshll.u32 %s4, 4
      %s177 = int_to_ptr.hbm [resolvable:$true] %s176
      %179 = dma.vmem_to_hbm [thread:$0]  %s175, 32, %s177, [#allocation4]
    $region37: #{tpu_custom_call.1} parent=1 // pred_fallthru
      _
    // Predicated region
    $region38: #{tpu_custom_call.1} parent=1 // pred_check
      _
    $region39: #{tpu_custom_call.1} parent=1 // pred_check_branch
      %181 = sbr.rel (0) target = $region41
    $region40: #{tpu_custom_call.1} parent=1 // pred_region
      %183 = vsyncadd [#allocation12], 0
      %s185 = sshll.u32 [#allocation11], 4
      %s186 = int_to_ptr.vmem [resolvable:$true] %s185
      %s187 = sshll.u32 %s5, 4
      %s188 = int_to_ptr.hbm [resolvable:$true] %s187
      %190 = dma.vmem_to_hbm [thread:$0]  %s186, 16, %s188, [#allocation12]
    $region41: #{tpu_custom_call.1} parent=1 // pred_fallthru
      _
    // Predicated region
    $region42: #{tpu_custom_call.1} parent=1 // pred_check
      _
    $region43: #{tpu_custom_call.1} parent=1 // pred_check_branch
      %192 = sbr.rel (0) target = $region45
    $region44: #{tpu_custom_call.1} parent=1 // pred_region
      %194 = vsyncadd [#allocation12], 0
      %s196 = sshll.u32 [#allocation13], 4
      %s197 = int_to_ptr.vmem [resolvable:$true] %s196
      %s198 = sshll.u32 %s6, 4
      %s199 = int_to_ptr.hbm [resolvable:$true] %s198
      %201 = dma.vmem_to_hbm [thread:$0]  %s197, 16, %s199, [#allocation12]
    $region45: #{tpu_custom_call.1} parent=1 // pred_fallthru
      _
    // Predicated region
    $region46: #{tpu_custom_call.1} parent=1 // pred_check
      _
    $region47: #{tpu_custom_call.1} parent=1 // pred_check_branch
      %203 = sbr.rel (0) target = $region49
    $region48: #{tpu_custom_call.1} parent=1 // pred_region
      %205 = vsyncadd [#allocation15], 0
      %s207 = sshll.u32 [#allocation14], 4
      %s208 = int_to_ptr.vmem [resolvable:$true] %s207
      %s209 = sshll.u32 %s7, 4
      %s210 = int_to_ptr.hbm [resolvable:$true] %s209
      %212 = dma.vmem_to_hbm [thread:$0]  %s208, 128, %s210, [#allocation15]
    $region49: #{tpu_custom_call.1} parent=1 // pred_fallthru
      _
    // Predicated region
    $region50: #{tpu_custom_call.1} parent=1 // pred_check
      _
    $region51: #{tpu_custom_call.1} parent=1 // pred_check_branch
      %214 = sbr.rel (0) target = $region53
    $region52: #{tpu_custom_call.1} parent=1 // pred_region
      %216 = dma.done [#allocation4], 32
    $region53: #{tpu_custom_call.1} parent=1 // pred_fallthru
      _
    // Predicated region
    $region54: #{tpu_custom_call.1} parent=1 // pred_check
      _
    $region55: #{tpu_custom_call.1} parent=1 // pred_check_branch
      %218 = sbr.rel (0) target = $region57
    $region56: #{tpu_custom_call.1} parent=1 // pred_region
      %220 = dma.done [#allocation12], 16
    $region57: #{tpu_custom_call.1} parent=1 // pred_fallthru
      _
    // Predicated region
    $region58: #{tpu_custom_call.1} parent=1 // pred_check
      _
    $region59: #{tpu_custom_call.1} parent=1 // pred_check_branch
      %222 = sbr.rel (0) target = $region61
    $region60: #{tpu_custom_call.1} parent=1 // pred_region
      %224 = dma.done [#allocation12], 16
    $region61: #{tpu_custom_call.1} parent=1 // pred_fallthru
      _
    // Predicated region
    $region62: #{tpu_custom_call.1} parent=1 // pred_check
      _
    $region63: #{tpu_custom_call.1} parent=1 // pred_check_branch
      %226 = sbr.rel (0) target = $region65
    $region64: #{tpu_custom_call.1} parent=1 // pred_region
      %228 = dma.done [#allocation15], 128
    $region65: #{tpu_custom_call.1} parent=1 // pred_fallthru
      _
    %229 = vsyncpa [#allocation3], 1
    %230 = vsyncpa [#allocation6], 1
    %231 = vsyncpa [#allocation9], 1
    %232 = vsyncpa [#allocation4], 1
    %233 = vsyncpa [#allocation12], 1
    %234 = vsyncpa [#allocation15], 1

</llo_original>
